<compile_context>
chip_gen: v5e
topology: v5e:2x2
jax: 0.10.0
libtpu: 0.0.40
codegen_flags: <defaults>
</compile_context>

<pallas_src>
import functools

import jax
import jax.numpy as jnp
from jax.experimental import pallas as pl
from jax.experimental.pallas import tpu as pltpu


# ---------------------------------------------------------------------------
# Pallas kernel: one batch block per grid step
# ---------------------------------------------------------------------------
def _graph_loss_kernel(gfa_ref, gfp_ref, gfn_ref, ca_ref, cp_ref, cn_ref,
                       per_ref, *, weight_loc, weight_feat, margin):
    eps = jnp.float32(1e-12)                 # torch F.normalize default eps
    wl = jnp.float32(weight_loc)
    wf = jnp.float32(weight_feat)

    # Features: (BB, F, N) -- F on sublanes, N on lanes.
    gfa = gfa_ref[...].astype(jnp.float32)
    gfp = gfp_ref[...].astype(jnp.float32)
    gfn = gfn_ref[...].astype(jnp.float32)
    bb = gfa.shape[0]
    n_nodes = gfa.shape[2]
    inv_nodes = jnp.float32(1.0 / n_nodes)

    def inv_row_norm(g):
        # 1 / max(||g_row||, eps) == rsqrt(max(sum_sq, eps^2)); no division,
        # no normalized copy of the (BB, F, N) tensor is materialized.
        ss = jnp.sum(g * g, axis=1)                              # (BB, N)
        return jax.lax.rsqrt(jnp.maximum(ss, eps * eps))

    inv_a = inv_row_norm(gfa)
    inv_p = inv_row_norm(gfp)
    inv_n = inv_row_norm(gfn)

    # fv = diag(g1n @ g2n.T) without the N x N matmul; the >0.99 clamp only
    # ever affects the diagonal downstream, so applying it to fv is exact.
    fv_ap = jnp.sum(gfa * gfp, axis=1) * inv_a * inv_p           # (BB, N)
    fv_an = jnp.sum(gfa * gfn, axis=1) * inv_a * inv_n
    fv_pn = jnp.sum(gfp * gfn, axis=1) * inv_p * inv_n

    # Coordinates: (BB, 2, N) -> x / y channels, lane-dense in N.
    ca = ca_ref[...].astype(jnp.float32)
    cp = cp_ref[...].astype(jnp.float32)
    cn = cn_ref[...].astype(jnp.float32)
    cax, cay = ca[:, 0, :], ca[:, 1, :]
    cpx, cpy = cp[:, 0, :], cp[:, 1, :]
    cnx, cny = cn[:, 0, :], cn[:, 1, :]

    # Stack the three pairs along the sublane (batch) axis so every lane
    # reduction over N runs once on a filled vreg batch.
    fv = jnp.concatenate([fv_ap, fv_an, fv_pn], axis=0)          # (3*BB, N)
    ex = jnp.concatenate([cax - cpx, cax - cnx, cpx - cnx], axis=0)
    ey = jnp.concatenate([cay - cpy, cay - cny, cpy - cny], axis=0)

    fv = jnp.where(fv > jnp.float32(0.99), jnp.float32(0.0), fv)
    sim_feat = jnp.sum(fv, axis=-1, keepdims=True) * inv_nodes   # (3*BB, 1)

    # Rank-1 weight matrix w = u u^T / ||u u^T||_F, with ||u u^T||_F = sum(u^2).
    u = fv - jnp.min(fv, axis=-1, keepdims=True)                 # (3*BB, N)
    s_u = jnp.sum(u, axis=-1, keepdims=True)
    usq = jnp.sum(u * u, axis=-1, keepdims=True)

    # sum_ij u_i u_j ||e_i - e_j||^2 collapsed to O(N).  Center e by its
    # u-weighted mean first: the cross term ||sum_i u_i e_i||^2 is then exactly
    # zero, removing catastrophic cancellation of two large positive sums.
    inv_su = jnp.float32(1.0) / jnp.maximum(s_u, eps)
    mux = jnp.sum(u * ex, axis=-1, keepdims=True) * inv_su
    muy = jnp.sum(u * ey, axis=-1, keepdims=True) * inv_su
    ecx = ex - mux
    ecy = ey - muy
    en2 = ecx * ecx + ecy * ecy                                  # ||e_i - mu||^2
    t_ue = jnp.sum(u * en2, axis=-1, keepdims=True)              # (3*BB, 1)
    dis_loc = jnp.float32(2.0) * s_u * t_ue / jnp.maximum(usq, eps)

    sim = wf * sim_feat - wl * dis_loc                           # (3*BB, 1)
    p_sim = sim[0:bb]
    n_sim_1 = sim[bb:2 * bb]
    n_sim_2 = sim[2 * bb:3 * bb]

    m = jnp.float32(margin)
    zero = jnp.float32(0.0)
    per_ref[...] = (jnp.maximum(n_sim_1 - p_sim + m, zero) +
                    jnp.maximum(n_sim_2 - p_sim + m, zero))      # (BB, 1)


# ---------------------------------------------------------------------------
# Block-size picker: largest divisor of B within a VMEM budget; keep the
# second-to-last dim of the (BLK_B, 1) output block Pallas-legal.
# ---------------------------------------------------------------------------
def _pick_block_b(B, N, F):
    lane_n = max(128, ((N + 127) // 128) * 128)
    sub_f = ((F + 7) // 8) * 8
    # double-buffered inputs + in-kernel f32 working set per sample (approx.)
    bytes_per_sample = 3 * (3 * sub_f + 3 * 8) * lane_n * 4
    budget = 8 * 1024 * 1024          # fits comfortably under every scoped default
    cap = max(1, min(B, 256, budget // max(1, bytes_per_sample)))
    blk = None
    for d in range(1, cap + 1):
        if B % d == 0 and (d % 8 == 0 or d == B):
            blk = d
    return blk if blk is not None else B


# ---------------------------------------------------------------------------
# Wrapper (GraphLoss.forward)
# ---------------------------------------------------------------------------
def graph_loss(graph_feat_a, coord_a, graph_feat_p, coord_p,
               graph_feat_n, coord_n, float_a, float_p, float_n,
               *, weight_loc, weight_feat, margin):
    # float_a / float_p / float_n are indexed but never used in the reference
    # forward pass, so they do not participate in the computation.
    del float_a, float_p, float_n

    B, N, F = graph_feat_a.shape

    # Lane-friendly layouts for the kernel: features (B, F, N), coords (B, 2, N).
    gfa = jnp.transpose(graph_feat_a, (0, 2, 1))
    gfp = jnp.transpose(graph_feat_p, (0, 2, 1))
    gfn = jnp.transpose(graph_feat_n, (0, 2, 1))
    ca = jnp.transpose(coord_a, (0, 2, 1))
    cp = jnp.transpose(coord_p, (0, 2, 1))
    cn = jnp.transpose(coord_n, (0, 2, 1))

    blk_b = _pick_block_b(B, N, F)
    grid = (B // blk_b,)

    feat_spec = pl.BlockSpec((blk_b, F, N), lambda b: (b, 0, 0))
    coord_spec = pl.BlockSpec((blk_b, 2, N), lambda b: (b, 0, 0))
    out_spec = pl.BlockSpec((blk_b, 1), lambda b: (b, 0))

    kernel = functools.partial(_graph_loss_kernel, weight_loc=weight_loc,
                               weight_feat=weight_feat, margin=margin)

    per = pl.pallas_call(
        kernel,
        out_shape=jax.ShapeDtypeStruct((B, 1), jnp.float32),
        grid=grid,
        in_specs=[feat_spec, feat_spec, feat_spec,
                  coord_spec, coord_spec, coord_spec],
        out_specs=out_spec,
        compiler_params=pltpu.CompilerParams(
            dimension_semantics=("parallel",),
            vmem_limit_bytes=32 * 1024 * 1024),
    )(gfa, gfp, gfn, ca, cp, cn)

    per = per.reshape(B)
    # Tiny B-element reduction stays in XLA so the batch grid axis remains
    # fully "parallel" (megacore-shardable on v7x).
    loss = (jnp.float32(0.5) * jnp.sum(per) / jnp.float32(B)).reshape(1)
    return loss, per


# ---------------------------------------------------------------------------
# Pure-JAX reference (same math as the PyTorch module) for validation.
# Uses the full N x N matmul / outer-product / pairwise-distance form so it
# also validates the algebraic rewrites inside the kernel.
# ---------------------------------------------------------------------------
def _ref_pair_sim(gf1, cd1, gf2, cd2, weight_loc, weight_feat):
    eps = 1e-12
    gf1n = gf1 / jnp.maximum(jnp.linalg.norm(gf1, axis=1, keepdims=True), eps)
    gf2n = gf2 / jnp.maximum(jnp.linalg.norm(gf2, axis=1, keepdims=True), eps)
    sim = gf1n @ gf2n.T
    sim = jnp.where(sim > 0.99, 0.0, sim)
    fv = jnp.diagonal(sim)
    sim_feat = fv.mean()
    w = (fv[None, :] - fv.min()) * (fv[:, None] - fv.min())
    w = w / jnp.maximum(jnp.linalg.norm(w.reshape(-1)), eps)
    d1 = cd1[:, None, :] - cd1[None, :, :]
    d2 = cd2[:, None, :] - cd2[None, :, :]
    loc_dis = ((d1 - d2) ** 2).sum(-1)
    return weight_feat * sim_feat - weight_loc * (loc_dis * w).sum()


def _ref_forward(gfa, ca, gfp, cp, gfn, cn, *, weight_loc, weight_feat, margin):
    B = gfa.shape[0]
    per = []
    for i in range(B):
        p = _ref_pair_sim(gfa[i], ca[i], gfp[i], cp[i], weight_loc, weight_feat)
        n1 = _ref_pair_sim(gfa[i], ca[i], gfn[i], cn[i], weight_loc, weight_feat)
        n2 = _ref_pair_sim(gfp[i], cp[i], gfn[i], cn[i], weight_loc, weight_feat)
        l1 = jnp.maximum(n1 - p + margin, 0.0)
        l2 = jnp.maximum(n2 - p + margin, 0.0)
        per.append(l1 + l2)
    per = jnp.stack(per)
    return (0.5 * per.sum() / B).reshape(1), per


# ---------------------------------------------------------------------------
if __name__ == "__main__":
    B, N, F = 2, 8, 32
    weight_loc, weight_feat, margin = 1.0, 1.0, 0.2

    key = jax.random.PRNGKey(0)
    ks = jax.random.split(key, 9)
    graph_feat_a = jax.random.normal(ks[0], (B, N, F), jnp.float32)
    graph_feat_p = jax.random.normal(ks[1], (B, N, F), jnp.float32)
    graph_feat_n = jax.random.normal(ks[2], (B, N, F), jnp.float32)
    coord_a = jax.random.uniform(ks[3], (B, N, 2), jnp.float32)
    coord_p = jax.random.uniform(ks[4], (B, N, 2), jnp.float32)
    coord_n = jax.random.uniform(ks[5], (B, N, 2), jnp.float32)
    float_a = jax.random.normal(ks[6], (B, 1), jnp.float32)
    float_p = jax.random.normal(ks[7], (B, 1), jnp.float32)
    float_n = jax.random.normal(ks[8], (B, 1), jnp.float32)

    fwd = jax.jit(functools.partial(graph_loss, weight_loc=weight_loc,
                                    weight_feat=weight_feat, margin=margin))

    loss_b, per_sample = fwd(graph_feat_a, coord_a, graph_feat_p, coord_p,
                             graph_feat_n, coord_n, float_a, float_p, float_n)
    loss_b = jax.block_until_ready(loss_b)
    per_sample = jax.block_until_ready(per_sample)

    # Hard-sample indices (same condition as the PyTorch module), built on the
    # host from the kernel's per-sample output.
    # TODO(synk): data-dependent Python list construction stays host-side.
    hard_sample = [i for i in range(B) if float(per_sample[i]) > 2.0 * margin]

    # Validate against a pure-JAX reference of the original PyTorch math.
    ref_loss, ref_per = _ref_forward(
        graph_feat_a, coord_a, graph_feat_p, coord_p, graph_feat_n, coord_n,
        weight_loc=weight_loc, weight_feat=weight_feat, margin=margin)
    assert jnp.allclose(loss_b, ref_loss, rtol=1e-3, atol=1e-4), (loss_b, ref_loss)
    assert jnp.allclose(per_sample, ref_per, rtol=1e-3, atol=1e-4), (per_sample, ref_per)

    print("KERNEL_OK")
</pallas_src>

<mosaic_0001>
module attributes {stable_mosaic.version = 11 : i64} {
  func.func @_graph_loss_kernel(%arg0: i32, %arg1: memref<2x32x8xf32, #tpu.memory_space<vmem>>, %arg2: memref<2x32x8xf32, #tpu.memory_space<vmem>>, %arg3: memref<2x32x8xf32, #tpu.memory_space<vmem>>, %arg4: memref<2x2x8xf32, #tpu.memory_space<vmem>>, %arg5: memref<2x2x8xf32, #tpu.memory_space<vmem>>, %arg6: memref<2x2x8xf32, #tpu.memory_space<vmem>>, %arg7: memref<2x1xf32, #tpu.memory_space<vmem>>) attributes {dimension_semantics = [#tpu.dimension_semantics<parallel>], iteration_bounds = array<i64: 1>, scalar_prefetch = 0 : i64, scratch_operands = 0 : i64, tpu.core_type = #tpu.core_type<tc>, window_params = [{transform_indices = @transform_0, window_bounds = array<i64: 2, 32, 8>}, {transform_indices = @transform_1, window_bounds = array<i64: 2, 32, 8>}, {transform_indices = @transform_2, window_bounds = array<i64: 2, 32, 8>}, {transform_indices = @transform_3, window_bounds = array<i64: 2, 2, 8>}, {transform_indices = @transform_4, window_bounds = array<i64: 2, 2, 8>}, {transform_indices = @transform_5, window_bounds = array<i64: 2, 2, 8>}, {transform_indices = @transform_6, window_bounds = array<i64: 2, 1>}]} {
    %c0 = arith.constant 0 : index
    %c0_0 = arith.constant 0 : index
    %c0_1 = arith.constant 0 : index
    %0 = vector.load %arg1[%c0, %c0_0, %c0_1] : memref<2x32x8xf32, #tpu.memory_space<vmem>>, vector<2x32x8xf32>
    %c0_2 = arith.constant 0 : index
    %c0_3 = arith.constant 0 : index
    %c0_4 = arith.constant 0 : index
    %1 = vector.load %arg2[%c0_2, %c0_3, %c0_4] : memref<2x32x8xf32, #tpu.memory_space<vmem>>, vector<2x32x8xf32>
    %c0_5 = arith.constant 0 : index
    %c0_6 = arith.constant 0 : index
    %c0_7 = arith.constant 0 : index
    %2 = vector.load %arg3[%c0_5, %c0_6, %c0_7] : memref<2x32x8xf32, #tpu.memory_space<vmem>>, vector<2x32x8xf32>
    %3 = arith.mulf %0, %0 : vector<2x32x8xf32>
    %cst = arith.constant dense<0.000000e+00> : vector<2x8xf32>
    %4 = vector.multi_reduction <add>, %3, %cst [1] : vector<2x32x8xf32> to vector<2x8xf32>
    %cst_8 = arith.constant 9.99999996E-13 : f32
    %cst_9 = arith.constant 9.99999996E-13 : f32
    %5 = arith.mulf %cst_8, %cst_9 : f32
    %6 = vector.broadcast %5 : f32 to vector<2x8xf32>
    %7 = arith.maximumf %4, %6 : vector<2x8xf32>
    %8 = math.rsqrt %7 : vector<2x8xf32>
    %9 = arith.mulf %1, %1 : vector<2x32x8xf32>
    %cst_10 = arith.constant dense<0.000000e+00> : vector<2x8xf32>
    %10 = vector.multi_reduction <add>, %9, %cst_10 [1] : vector<2x32x8xf32> to vector<2x8xf32>
    %cst_11 = arith.constant 9.99999996E-13 : f32
    %cst_12 = arith.constant 9.99999996E-13 : f32
    %11 = arith.mulf %cst_11, %cst_12 : f32
    %12 = vector.broadcast %11 : f32 to vector<2x8xf32>
    %13 = arith.maximumf %10, %12 : vector<2x8xf32>
    %14 = math.rsqrt %13 : vector<2x8xf32>
    %15 = arith.mulf %2, %2 : vector<2x32x8xf32>
    %cst_13 = arith.constant dense<0.000000e+00> : vector<2x8xf32>
    %16 = vector.multi_reduction <add>, %15, %cst_13 [1] : vector<2x32x8xf32> to vector<2x8xf32>
    %cst_14 = arith.constant 9.99999996E-13 : f32
    %cst_15 = arith.constant 9.99999996E-13 : f32
    %17 = arith.mulf %cst_14, %cst_15 : f32
    %18 = vector.broadcast %17 : f32 to vector<2x8xf32>
    %19 = arith.maximumf %16, %18 : vector<2x8xf32>
    %20 = math.rsqrt %19 : vector<2x8xf32>
    %21 = arith.mulf %0, %1 : vector<2x32x8xf32>
    %cst_16 = arith.constant dense<0.000000e+00> : vector<2x8xf32>
    %22 = vector.multi_reduction <add>, %21, %cst_16 [1] : vector<2x32x8xf32> to vector<2x8xf32>
    %23 = arith.mulf %22, %8 : vector<2x8xf32>
    %24 = arith.mulf %23, %14 : vector<2x8xf32>
    %25 = arith.mulf %0, %2 : vector<2x32x8xf32>
    %cst_17 = arith.constant dense<0.000000e+00> : vector<2x8xf32>
    %26 = vector.multi_reduction <add>, %25, %cst_17 [1] : vector<2x32x8xf32> to vector<2x8xf32>
    %27 = arith.mulf %26, %8 : vector<2x8xf32>
    %28 = arith.mulf %27, %20 : vector<2x8xf32>
    %29 = arith.mulf %1, %2 : vector<2x32x8xf32>
    %cst_18 = arith.constant dense<0.000000e+00> : vector<2x8xf32>
    %30 = vector.multi_reduction <add>, %29, %cst_18 [1] : vector<2x32x8xf32> to vector<2x8xf32>
    %31 = arith.mulf %30, %14 : vector<2x8xf32>
    %32 = arith.mulf %31, %20 : vector<2x8xf32>
    %c0_19 = arith.constant 0 : index
    %c0_20 = arith.constant 0 : index
    %c0_21 = arith.constant 0 : index
    %33 = vector.load %arg4[%c0_19, %c0_20, %c0_21] : memref<2x2x8xf32, #tpu.memory_space<vmem>>, vector<2x2x8xf32>
    %c0_22 = arith.constant 0 : index
    %c0_23 = arith.constant 0 : index
    %c0_24 = arith.constant 0 : index
    %34 = vector.load %arg5[%c0_22, %c0_23, %c0_24] : memref<2x2x8xf32, #tpu.memory_space<vmem>>, vector<2x2x8xf32>
    %c0_25 = arith.constant 0 : index
    %c0_26 = arith.constant 0 : index
    %c0_27 = arith.constant 0 : index
    %35 = vector.load %arg6[%c0_25, %c0_26, %c0_27] : memref<2x2x8xf32, #tpu.memory_space<vmem>>, vector<2x2x8xf32>
    %36 = vector.extract_strided_slice %33 {offsets = [0, 0, 0], sizes = [2, 1, 8], strides = [1, 1, 1]} : vector<2x2x8xf32> to vector<2x1x8xf32>
    %37 = vector.shape_cast %36 : vector<2x1x8xf32> to vector<2x8xf32>
    %38 = vector.extract_strided_slice %33 {offsets = [0, 1, 0], sizes = [2, 1, 8], strides = [1, 1, 1]} : vector<2x2x8xf32> to vector<2x1x8xf32>
    %39 = vector.shape_cast %38 : vector<2x1x8xf32> to vector<2x8xf32>
    %40 = vector.extract_strided_slice %34 {offsets = [0, 0, 0], sizes = [2, 1, 8], strides = [1, 1, 1]} : vector<2x2x8xf32> to vector<2x1x8xf32>
    %41 = vector.shape_cast %40 : vector<2x1x8xf32> to vector<2x8xf32>
    %42 = vector.extract_strided_slice %34 {offsets = [0, 1, 0], sizes = [2, 1, 8], strides = [1, 1, 1]} : vector<2x2x8xf32> to vector<2x1x8xf32>
    %43 = vector.shape_cast %42 : vector<2x1x8xf32> to vector<2x8xf32>
    %44 = vector.extract_strided_slice %35 {offsets = [0, 0, 0], sizes = [2, 1, 8], strides = [1, 1, 1]} : vector<2x2x8xf32> to vector<2x1x8xf32>
    %45 = vector.shape_cast %44 : vector<2x1x8xf32> to vector<2x8xf32>
    %46 = vector.extract_strided_slice %35 {offsets = [0, 1, 0], sizes = [2, 1, 8], strides = [1, 1, 1]} : vector<2x2x8xf32> to vector<2x1x8xf32>
    %47 = vector.shape_cast %46 : vector<2x1x8xf32> to vector<2x8xf32>
    %48 = tpu.concatenate %24, %28, %32 in 0 : vector<2x8xf32>, vector<2x8xf32>, vector<2x8xf32> -> vector<6x8xf32>
    %49 = arith.subf %37, %41 : vector<2x8xf32>
    %50 = arith.subf %37, %45 : vector<2x8xf32>
    %51 = arith.subf %41, %45 : vector<2x8xf32>
    %52 = tpu.concatenate %49, %50, %51 in 0 : vector<2x8xf32>, vector<2x8xf32>, vector<2x8xf32> -> vector<6x8xf32>
    %53 = arith.subf %39, %43 : vector<2x8xf32>
    %54 = arith.subf %39, %47 : vector<2x8xf32>
    %55 = arith.subf %43, %47 : vector<2x8xf32>
    %56 = tpu.concatenate %53, %54, %55 in 0 : vector<2x8xf32>, vector<2x8xf32>, vector<2x8xf32> -> vector<6x8xf32>
    %cst_28 = arith.constant 9.900000e-01 : f32
    %57 = vector.broadcast %cst_28 : f32 to vector<6x8xf32>
    %58 = arith.cmpf ogt, %48, %57 : vector<6x8xf32>
    %cst_29 = arith.constant 0.000000e+00 : f32
    %59 = vector.broadcast %cst_29 : f32 to vector<6x8xf32>
    %60 = arith.select %58, %59, %48 : vector<6x8xi1>, vector<6x8xf32>
    %cst_30 = arith.constant dense<0.000000e+00> : vector<6xf32>
    %61 = vector.multi_reduction <add>, %60, %cst_30 [1] : vector<6x8xf32> to vector<6xf32>
    %62 = vector.shape_cast %61 : vector<6xf32> to vector<6x1xf32>
    %cst_31 = arith.constant 1.250000e-01 : f32
    %63 = vector.broadcast %cst_31 : f32 to vector<6x1xf32>
    %64 = arith.mulf %62, %63 : vector<6x1xf32>
    %cst_32 = arith.constant dense<0x7F800000> : vector<6xf32>
    %65 = vector.multi_reduction <minimumf>, %60, %cst_32 [1] : vector<6x8xf32> to vector<6xf32>
    %66 = vector.shape_cast %65 : vector<6xf32> to vector<6x1xf32>
    %67 = vector.broadcast %66 : vector<6x1xf32> to vector<6x8xf32>
    %68 = arith.subf %60, %67 : vector<6x8xf32>
    %cst_33 = arith.constant dense<0.000000e+00> : vector<6xf32>
    %69 = vector.multi_reduction <add>, %68, %cst_33 [1] : vector<6x8xf32> to vector<6xf32>
    %70 = vector.shape_cast %69 : vector<6xf32> to vector<6x1xf32>
    %71 = arith.mulf %68, %68 : vector<6x8xf32>
    %cst_34 = arith.constant dense<0.000000e+00> : vector<6xf32>
    %72 = vector.multi_reduction <add>, %71, %cst_34 [1] : vector<6x8xf32> to vector<6xf32>
    %73 = vector.shape_cast %72 : vector<6xf32> to vector<6x1xf32>
    %cst_35 = arith.constant 9.99999996E-13 : f32
    %74 = vector.broadcast %cst_35 : f32 to vector<6x1xf32>
    %75 = arith.maximumf %70, %74 : vector<6x1xf32>
    %cst_36 = arith.constant 1.000000e+00 : f32
    %76 = vector.broadcast %cst_36 : f32 to vector<6x1xf32>
    %77 = arith.divf %76, %75 : vector<6x1xf32>
    %78 = arith.mulf %68, %52 : vector<6x8xf32>
    %cst_37 = arith.constant dense<0.000000e+00> : vector<6xf32>
    %79 = vector.multi_reduction <add>, %78, %cst_37 [1] : vector<6x8xf32> to vector<6xf32>
    %80 = vector.shape_cast %79 : vector<6xf32> to vector<6x1xf32>
    %81 = arith.mulf %80, %77 : vector<6x1xf32>
    %82 = arith.mulf %68, %56 : vector<6x8xf32>
    %cst_38 = arith.constant dense<0.000000e+00> : vector<6xf32>
    %83 = vector.multi_reduction <add>, %82, %cst_38 [1] : vector<6x8xf32> to vector<6xf32>
    %84 = vector.shape_cast %83 : vector<6xf32> to vector<6x1xf32>
    %85 = arith.mulf %84, %77 : vector<6x1xf32>
    %86 = vector.broadcast %81 : vector<6x1xf32> to vector<6x8xf32>
    %87 = arith.subf %52, %86 : vector<6x8xf32>
    %88 = vector.broadcast %85 : vector<6x1xf32> to vector<6x8xf32>
    %89 = arith.subf %56, %88 : vector<6x8xf32>
    %90 = arith.mulf %87, %87 : vector<6x8xf32>
    %91 = arith.mulf %89, %89 : vector<6x8xf32>
    %92 = arith.addf %90, %91 : vector<6x8xf32>
    %93 = arith.mulf %68, %92 : vector<6x8xf32>
    %cst_39 = arith.constant dense<0.000000e+00> : vector<6xf32>
    %94 = vector.multi_reduction <add>, %93, %cst_39 [1] : vector<6x8xf32> to vector<6xf32>
    %95 = vector.shape_cast %94 : vector<6xf32> to vector<6x1xf32>
    %cst_40 = arith.constant 2.000000e+00 : f32
    %96 = vector.broadcast %cst_40 : f32 to vector<6x1xf32>
    %97 = arith.mulf %96, %70 : vector<6x1xf32>
    %98 = arith.mulf %97, %95 : vector<6x1xf32>
    %cst_41 = arith.constant 9.99999996E-13 : f32
    %99 = vector.broadcast %cst_41 : f32 to vector<6x1xf32>
    %100 = arith.maximumf %73, %99 : vector<6x1xf32>
    %101 = arith.divf %98, %100 : vector<6x1xf32>
    %cst_42 = arith.constant 1.000000e+00 : f32
    %102 = vector.broadcast %cst_42 : f32 to vector<6x1xf32>
    %103 = arith.mulf %102, %64 : vector<6x1xf32>
    %cst_43 = arith.constant 1.000000e+00 : f32
    %104 = vector.broadcast %cst_43 : f32 to vector<6x1xf32>
    %105 = arith.mulf %104, %101 : vector<6x1xf32>
    %106 = arith.subf %103, %105 : vector<6x1xf32>
    %107 = vector.extract_strided_slice %106 {offsets = [0, 0], sizes = [2, 1], strides = [1, 1]} : vector<6x1xf32> to vector<2x1xf32>
    %108 = vector.extract_strided_slice %106 {offsets = [2, 0], sizes = [2, 1], strides = [1, 1]} : vector<6x1xf32> to vector<2x1xf32>
    %109 = vector.extract_strided_slice %106 {offsets = [4, 0], sizes = [2, 1], strides = [1, 1]} : vector<6x1xf32> to vector<2x1xf32>
    %110 = arith.subf %108, %107 : vector<2x1xf32>
    %cst_44 = arith.constant 2.000000e-01 : f32
    %111 = vector.broadcast %cst_44 : f32 to vector<2x1xf32>
    %112 = arith.addf %110, %111 : vector<2x1xf32>
    %cst_45 = arith.constant 0.000000e+00 : f32
    %113 = vector.broadcast %cst_45 : f32 to vector<2x1xf32>
    %114 = arith.maximumf %112, %113 : vector<2x1xf32>
    %115 = arith.subf %109, %107 : vector<2x1xf32>
    %cst_46 = arith.constant 2.000000e-01 : f32
    %116 = vector.broadcast %cst_46 : f32 to vector<2x1xf32>
    %117 = arith.addf %115, %116 : vector<2x1xf32>
    %cst_47 = arith.constant 0.000000e+00 : f32
    %118 = vector.broadcast %cst_47 : f32 to vector<2x1xf32>
    %119 = arith.maximumf %117, %118 : vector<2x1xf32>
    %120 = arith.addf %114, %119 : vector<2x1xf32>
    %c0_48 = arith.constant 0 : index
    %c0_49 = arith.constant 0 : index
    %121 = vector.load %arg7[%c0_48, %c0_49] : memref<2x1xf32, #tpu.memory_space<vmem>>, vector<2x1xf32>
    tpu.vector_store %arg7[%c0_48, %c0_49], %120 {strides = array<i32>} : memref<2x1xf32, #tpu.memory_space<vmem>>, vector<2x1xf32>,
    return
  }
  func.func @transform_0(%arg0: i32) -> (i32, i32, i32) {
    %c0_i32 = arith.constant 0 : i32
    %c0_i32_0 = arith.constant 0 : i32
    %c0_i32_1 = arith.constant 0 : i32
    return %arg0, %c0_i32, %c0_i32_0 : i32, i32, i32
  }
  func.func @transform_1(%arg0: i32) -> (i32, i32, i32) {
    %c0_i32 = arith.constant 0 : i32
    %c0_i32_0 = arith.constant 0 : i32
    %c0_i32_1 = arith.constant 0 : i32
    return %arg0, %c0_i32, %c0_i32_0 : i32, i32, i32
  }
  func.func @transform_2(%arg0: i32) -> (i32, i32, i32) {
    %c0_i32 = arith.constant 0 : i32
    %c0_i32_0 = arith.constant 0 : i32
    %c0_i32_1 = arith.constant 0 : i32
    return %arg0, %c0_i32, %c0_i32_0 : i32, i32, i32
  }
  func.func @transform_3(%arg0: i32) -> (i32, i32, i32) {
    %c0_i32 = arith.constant 0 : i32
    %c0_i32_0 = arith.constant 0 : i32
    %c0_i32_1 = arith.constant 0 : i32
    return %arg0, %c0_i32, %c0_i32_0 : i32, i32, i32
  }
  func.func @transform_4(%arg0: i32) -> (i32, i32, i32) {
    %c0_i32 = arith.constant 0 : i32
    %c0_i32_0 = arith.constant 0 : i32
    %c0_i32_1 = arith.constant 0 : i32
    return %arg0, %c0_i32, %c0_i32_0 : i32, i32, i32
  }
  func.func @transform_5(%arg0: i32) -> (i32, i32, i32) {
    %c0_i32 = arith.constant 0 : i32
    %c0_i32_0 = arith.constant 0 : i32
    %c0_i32_1 = arith.constant 0 : i32
    return %arg0, %c0_i32, %c0_i32_0 : i32, i32, i32
  }
  func.func @transform_6(%arg0: i32) -> (i32, i32) {
    %c0_i32 = arith.constant 0 : i32
    %c0_i32_0 = arith.constant 0 : i32
    return %arg0, %c0_i32 : i32, i32
  }
}

</mosaic_0001>

<llo_original>
// kernel: graph_loss.1
$region0: #{graph_loss.1}
  #allocation0 [shape = 'u32[]', space=smem, size = 0x4, offset = 0x4, fixed_abs, tag = 'smem constant byte address 0x4 - core index']
  #allocation1 [shape = 'u32[72,128]{1,0:T(1,128)}', space=vmem, size = 0x9000, scoped, tag = 'internal scratch']
  %s0 = inlined_call_operand.vmem [shape: f32[2,32,8], index: 0, kind: input, shape index: {}]
  %s1 = inlined_call_operand.vmem [shape: f32[2,32,8], index: 1, kind: input, shape index: {}]
  %s2 = inlined_call_operand.vmem [shape: f32[2,32,8], index: 2, kind: input, shape index: {}]
  %s3 = inlined_call_operand.vmem [shape: f32[2,2,8], index: 3, kind: input, shape index: {}]
  %s4 = inlined_call_operand.vmem [shape: f32[2,2,8], index: 4, kind: input, shape index: {}]
  %s5 = inlined_call_operand.vmem [shape: f32[2,2,8], index: 5, kind: input, shape index: {}]
  %s6 = inlined_call_operand.vmem [shape: f32[2,1], index: 6, kind: output, shape index: {}]
  %s7 = sld [smem:[#allocation0]]
  $region34: #{graph_loss.1} parent=0
    _
  %s9 = ssub.s32 1, %s7
  %s10 = scalar_select 0, %s9, %s7
  // Predicated region
  $region2: #{graph_loss.1} parent=0 // pred_check
    _
  $region3: #{graph_loss.1} parent=0 // pred_check_branch
    %12 = sbr.rel (0) target = $region5
  $region4: #{graph_loss.1} parent=0 // pred_region
    _
  $region5: #{graph_loss.1} parent=0 // pred_fallthru
    _
  // Predicated region
  $region6: #{graph_loss.1} parent=0 // pred_check
    _
  $region7: #{graph_loss.1} parent=0 // pred_check_branch
    %14 = sbr.rel (0) target = $region9
  $region8: #{graph_loss.1} parent=0 // pred_region
    _
  $region9: #{graph_loss.1} parent=0 // pred_fallthru
    _
  // Predicated region
  $region10: #{graph_loss.1} parent=0 // pred_check
    _
  $region11: #{graph_loss.1} parent=0 // pred_check_branch
    %16 = sbr.rel (0) target = $region13
  $region12: #{graph_loss.1} parent=0 // pred_region
    _
  $region13: #{graph_loss.1} parent=0 // pred_fallthru
    _
  // Predicated region
  $region14: #{graph_loss.1} parent=0 // pred_check
    _
  $region15: #{graph_loss.1} parent=0 // pred_check_branch
    %18 = sbr.rel (0) target = $region17
  $region16: #{graph_loss.1} parent=0 // pred_region
    _
  $region17: #{graph_loss.1} parent=0 // pred_fallthru
    _
  // Predicated region
  $region18: #{graph_loss.1} parent=0 // pred_check
    _
  $region19: #{graph_loss.1} parent=0 // pred_check_branch
    %20 = sbr.rel (0) target = $region21
  $region20: #{graph_loss.1} parent=0 // pred_region
    _
  $region21: #{graph_loss.1} parent=0 // pred_fallthru
    _
  // Predicated region
  $region22: #{graph_loss.1} parent=0 // pred_check
    _
  $region23: #{graph_loss.1} parent=0 // pred_check_branch
    %22 = sbr.rel (0) target = $region25
  $region24: #{graph_loss.1} parent=0 // pred_region
    _
  $region25: #{graph_loss.1} parent=0 // pred_fallthru
    _
  %v23 = vld [vmem:[%s0] sm:$0xff]
  %v24 = vld [vmem:[%s0 + $0x8] sm:$0xff]
  %v25 = vld [vmem:[%s0 + $0x10] sm:$0xff]
  %v26 = vld [vmem:[%s0 + $0x18] sm:$0xff]
  %v27 = vld [vmem:[%s0 + $0x20] sm:$0xff]
  %v28 = vld [vmem:[%s0 + $0x28] sm:$0xff]
  %v29 = vld [vmem:[%s0 + $0x30] sm:$0xff]
  %v30 = vld [vmem:[%s0 + $0x38] sm:$0xff]
  %v31 = vld [vmem:[%s1] sm:$0xff]
  %v32 = vld [vmem:[%s1 + $0x8] sm:$0xff]
  %v33 = vld [vmem:[%s1 + $0x10] sm:$0xff]
  %v34 = vld [vmem:[%s1 + $0x18] sm:$0xff]
  %v35 = vld [vmem:[%s1 + $0x20] sm:$0xff]
  %v36 = vld [vmem:[%s1 + $0x28] sm:$0xff]
  %v37 = vld [vmem:[%s1 + $0x30] sm:$0xff]
  %v38 = vld [vmem:[%s1 + $0x38] sm:$0xff]
  %v39 = vld [vmem:[%s2] sm:$0xff]
  %v40 = vld [vmem:[%s2 + $0x8] sm:$0xff]
  %v41 = vld [vmem:[%s2 + $0x10] sm:$0xff]
  %v42 = vld [vmem:[%s2 + $0x18] sm:$0xff]
  %v43 = vld [vmem:[%s2 + $0x20] sm:$0xff]
  %v44 = vld [vmem:[%s2 + $0x28] sm:$0xff]
  %v45 = vld [vmem:[%s2 + $0x30] sm:$0xff]
  %v46 = vld [vmem:[%s2 + $0x38] sm:$0xff]
  %v47 = vmul.f32 %v23, %v23
  %v48 = vmul.f32 %v24, %v24
  %v49 = vmul.f32 %v25, %v25
  %v50 = vmul.f32 %v26, %v26
  %v51 = vmul.f32 %v27, %v27
  %v52 = vmul.f32 %v28, %v28
  %v53 = vmul.f32 %v29, %v29
  %v54 = vmul.f32 %v30, %v30
  %vm55 = vcmask 64512
  %v56 = vsel %vm55, %v47, 0.0
  %v57 = vsel %vm55, %v48, 0.0
  %v58 = vadd.f32 %v56, %v57
  %v59 = vsel %vm55, %v49, 0.0
  %v60 = vadd.f32 %v58, %v59
  %v61 = vsel %vm55, %v50, 0.0
  %v62 = vadd.f32 %v60, %v61
  %v63 = vrot.slane %v62, 4
  %v64 = vadd.f32 %v62, %v63
  %v65 = vrot.slane %v64, 2
  %v66 = vadd.f32 %v64, %v65
  %v67 = vrot.slane %v66, 1
  %v68 = vadd.f32 %v66, %v67
  %v69 = vsel %vm55, %v51, 0.0
  %v70 = vsel %vm55, %v52, 0.0
  %v71 = vadd.f32 %v69, %v70
  %v72 = vsel %vm55, %v53, 0.0
  %v73 = vadd.f32 %v71, %v72
  %v74 = vsel %vm55, %v54, 0.0
  %v75 = vadd.f32 %v73, %v74
  %v76 = vrot.slane %v75, 4
  %v77 = vadd.f32 %v75, %v76
  %v78 = vrot.slane %v77, 2
  %v79 = vadd.f32 %v77, %v78
  %v80 = vrot.slane %v79, 1
  %v81 = vadd.f32 %v79, %v80
  %v82 = vmax.f32 %v68, 1e-24
  %v83 = vmax.f32 %v81, 1e-24
  %v84 = vrsqrt.pop %v82
  %v85 = vmul.f32 %v84, %v82
  %v86 = vmul.f32 %v85, %v84
  %v87 = vmul.f32 0.5, %v86
  %v88 = vsub.f32 1.5, %v87
  %v89 = vmul.f32 %v84, %v88
  %vm90 = vweird.f32 %v82
  %vm91 = vweird.f32 %v84
  %vm92 = vmor %vm90, %vm91
  %v93 = vsel %vm92, %v84, %v89
  %v94 = vrsqrt.pop %v83
  %v95 = vmul.f32 %v94, %v83
  %v96 = vmul.f32 %v95, %v94
  %v97 = vmul.f32 0.5, %v96
  %v98 = vsub.f32 1.5, %v97
  %v99 = vmul.f32 %v94, %v98
  %vm100 = vweird.f32 %v83
  %vm101 = vweird.f32 %v94
  %vm102 = vmor %vm100, %vm101
  %v103 = vsel %vm102, %v94, %v99
  %v104 = vmul.f32 %v31, %v31
  %v105 = vmul.f32 %v32, %v32
  %v106 = vmul.f32 %v33, %v33
  %v107 = vmul.f32 %v34, %v34
  %v108 = vmul.f32 %v35, %v35
  %v109 = vmul.f32 %v36, %v36
  %v110 = vmul.f32 %v37, %v37
  %v111 = vmul.f32 %v38, %v38
  %v112 = vsel %vm55, %v104, 0.0
  %v113 = vsel %vm55, %v105, 0.0
  %v114 = vadd.f32 %v112, %v113
  %v115 = vsel %vm55, %v106, 0.0
  %v116 = vadd.f32 %v114, %v115
  %v117 = vsel %vm55, %v107, 0.0
  %v118 = vadd.f32 %v116, %v117
  %v119 = vrot.slane %v118, 4
  %v120 = vadd.f32 %v118, %v119
  %v121 = vrot.slane %v120, 2
  %v122 = vadd.f32 %v120, %v121
  %v123 = vrot.slane %v122, 1
  %v124 = vadd.f32 %v122, %v123
  %v125 = vsel %vm55, %v108, 0.0
  %v126 = vsel %vm55, %v109, 0.0
  %v127 = vadd.f32 %v125, %v126
  %v128 = vsel %vm55, %v110, 0.0
  %v129 = vadd.f32 %v127, %v128
  %v130 = vsel %vm55, %v111, 0.0
  %v131 = vadd.f32 %v129, %v130
  %v132 = vrot.slane %v131, 4
  %v133 = vadd.f32 %v131, %v132
  %v134 = vrot.slane %v133, 2
  %v135 = vadd.f32 %v133, %v134
  %v136 = vrot.slane %v135, 1
  %v137 = vadd.f32 %v135, %v136
  %v138 = vmax.f32 %v124, 1e-24
  %v139 = vmax.f32 %v137, 1e-24
  %v140 = vrsqrt.pop %v138
  %v141 = vmul.f32 %v140, %v138
  %v142 = vmul.f32 %v141, %v140
  %v143 = vmul.f32 0.5, %v142
  %v144 = vsub.f32 1.5, %v143
  %v145 = vmul.f32 %v140, %v144
  %vm146 = vweird.f32 %v138
  %vm147 = vweird.f32 %v140
  %vm148 = vmor %vm146, %vm147
  %v149 = vsel %vm148, %v140, %v145
  %v150 = vrsqrt.pop %v139
  %v151 = vmul.f32 %v150, %v139
  %v152 = vmul.f32 %v151, %v150
  %v153 = vmul.f32 0.5, %v152
  %v154 = vsub.f32 1.5, %v153
  %v155 = vmul.f32 %v150, %v154
  %vm156 = vweird.f32 %v139
  %vm157 = vweird.f32 %v150
  %vm158 = vmor %vm156, %vm157
  %v159 = vsel %vm158, %v150, %v155
  %v160 = vmul.f32 %v39, %v39
  %v161 = vmul.f32 %v40, %v40
  %v162 = vmul.f32 %v41, %v41
  %v163 = vmul.f32 %v42, %v42
  %v164 = vmul.f32 %v43, %v43
  %v165 = vmul.f32 %v44, %v44
  %v166 = vmul.f32 %v45, %v45
  %v167 = vmul.f32 %v46, %v46
  %v168 = vsel %vm55, %v160, 0.0
  %v169 = vsel %vm55, %v161, 0.0
  %v170 = vadd.f32 %v168, %v169
  %v171 = vsel %vm55, %v162, 0.0
  %v172 = vadd.f32 %v170, %v171
  %v173 = vsel %vm55, %v163, 0.0
  %v174 = vadd.f32 %v172, %v173
  %v175 = vrot.slane %v174, 4
  %v176 = vadd.f32 %v174, %v175
  %v177 = vrot.slane %v176, 2
  %v178 = vadd.f32 %v176, %v177
  %v179 = vrot.slane %v178, 1
  %v180 = vadd.f32 %v178, %v179
  %v181 = vsel %vm55, %v164, 0.0
  %v182 = vsel %vm55, %v165, 0.0
  %v183 = vadd.f32 %v181, %v182
  %v184 = vsel %vm55, %v166, 0.0
  %v185 = vadd.f32 %v183, %v184
  %v186 = vsel %vm55, %v167, 0.0
  %v187 = vadd.f32 %v185, %v186
  %v188 = vrot.slane %v187, 4
  %v189 = vadd.f32 %v187, %v188
  %v190 = vrot.slane %v189, 2
  %v191 = vadd.f32 %v189, %v190
  %v192 = vrot.slane %v191, 1
  %v193 = vadd.f32 %v191, %v192
  %v194 = vmax.f32 %v180, 1e-24
  %v195 = vmax.f32 %v193, 1e-24
  %v196 = vrsqrt.pop %v194
  %v197 = vmul.f32 %v196, %v194
  %v198 = vmul.f32 %v197, %v196
  %v199 = vmul.f32 0.5, %v198
  %v200 = vsub.f32 1.5, %v199
  %v201 = vmul.f32 %v196, %v200
  %vm202 = vweird.f32 %v194
  %vm203 = vweird.f32 %v196
  %vm204 = vmor %vm202, %vm203
  %v205 = vsel %vm204, %v196, %v201
  %v206 = vrsqrt.pop %v195
  %v207 = vmul.f32 %v206, %v195
  %v208 = vmul.f32 %v207, %v206
  %v209 = vmul.f32 0.5, %v208
  %v210 = vsub.f32 1.5, %v209
  %v211 = vmul.f32 %v206, %v210
  %vm212 = vweird.f32 %v195
  %vm213 = vweird.f32 %v206
  %vm214 = vmor %vm212, %vm213
  %v215 = vsel %vm214, %v206, %v211
  %v216 = vmul.f32 %v23, %v31
  %v217 = vmul.f32 %v24, %v32
  %v218 = vmul.f32 %v25, %v33
  %v219 = vmul.f32 %v26, %v34
  %v220 = vmul.f32 %v27, %v35
  %v221 = vmul.f32 %v28, %v36
  %v222 = vmul.f32 %v29, %v37
  %v223 = vmul.f32 %v30, %v38
  %v224 = vsel %vm55, %v216, 0.0
  %v225 = vsel %vm55, %v217, 0.0
  %v226 = vadd.f32 %v224, %v225
  %v227 = vsel %vm55, %v218, 0.0
  %v228 = vadd.f32 %v226, %v227
  %v229 = vsel %vm55, %v219, 0.0
  %v230 = vadd.f32 %v228, %v229
  %v231 = vrot.slane %v230, 4
  %v232 = vadd.f32 %v230, %v231
  %v233 = vrot.slane %v232, 2
  %v234 = vadd.f32 %v232, %v233
  %v235 = vrot.slane %v234, 1
  %v236 = vadd.f32 %v234, %v235
  %v237 = vsel %vm55, %v220, 0.0
  %v238 = vsel %vm55, %v221, 0.0
  %v239 = vadd.f32 %v237, %v238
  %v240 = vsel %vm55, %v222, 0.0
  %v241 = vadd.f32 %v239, %v240
  %v242 = vsel %vm55, %v223, 0.0
  %v243 = vadd.f32 %v241, %v242
  %v244 = vrot.slane %v243, 4
  %v245 = vadd.f32 %v243, %v244
  %v246 = vrot.slane %v245, 2
  %v247 = vadd.f32 %v245, %v246
  %v248 = vrot.slane %v247, 1
  %v249 = vadd.f32 %v247, %v248
  %v250 = vmul.f32 %v236, %v93
  %v251 = vmul.f32 %v249, %v103
  %v252 = vmul.f32 %v250, %v149
  %v253 = vmul.f32 %v251, %v159
  %v254 = vmul.f32 %v23, %v39
  %v255 = vmul.f32 %v24, %v40
  %v256 = vmul.f32 %v25, %v41
  %v257 = vmul.f32 %v26, %v42
  %v258 = vmul.f32 %v27, %v43
  %v259 = vmul.f32 %v28, %v44
  %v260 = vmul.f32 %v29, %v45
  %v261 = vmul.f32 %v30, %v46
  %v262 = vsel %vm55, %v254, 0.0
  %v263 = vsel %vm55, %v255, 0.0
  %v264 = vadd.f32 %v262, %v263
  %v265 = vsel %vm55, %v256, 0.0
  %v266 = vadd.f32 %v264, %v265
  %v267 = vsel %vm55, %v257, 0.0
  %v268 = vadd.f32 %v266, %v267
  %v269 = vrot.slane %v268, 4
  %v270 = vadd.f32 %v268, %v269
  %v271 = vrot.slane %v270, 2
  %v272 = vadd.f32 %v270, %v271
  %v273 = vrot.slane %v272, 1
  %v274 = vadd.f32 %v272, %v273
  %v275 = vsel %vm55, %v258, 0.0
  %v276 = vsel %vm55, %v259, 0.0
  %v277 = vadd.f32 %v275, %v276
  %v278 = vsel %vm55, %v260, 0.0
  %v279 = vadd.f32 %v277, %v278
  %v280 = vsel %vm55, %v261, 0.0
  %v281 = vadd.f32 %v279, %v280
  %v282 = vrot.slane %v281, 4
  %v283 = vadd.f32 %v281, %v282
  %v284 = vrot.slane %v283, 2
  %v285 = vadd.f32 %v283, %v284
  %v286 = vrot.slane %v285, 1
  %v287 = vadd.f32 %v285, %v286
  %v288 = vmul.f32 %v274, %v93
  %v289 = vmul.f32 %v287, %v103
  %v290 = vmul.f32 %v288, %v205
  %v291 = vmul.f32 %v289, %v215
  %v292 = vmul.f32 %v31, %v39
  %v293 = vmul.f32 %v32, %v40
  %v294 = vmul.f32 %v33, %v41
  %v295 = vmul.f32 %v34, %v42
  %v296 = vmul.f32 %v35, %v43
  %v297 = vmul.f32 %v36, %v44
  %v298 = vmul.f32 %v37, %v45
  %v299 = vmul.f32 %v38, %v46
  %v300 = vsel %vm55, %v292, 0.0
  %v301 = vsel %vm55, %v293, 0.0
  %v302 = vadd.f32 %v300, %v301
  %v303 = vsel %vm55, %v294, 0.0
  %v304 = vadd.f32 %v302, %v303
  %v305 = vsel %vm55, %v295, 0.0
  %v306 = vadd.f32 %v304, %v305
  %v307 = vrot.slane %v306, 4
  %v308 = vadd.f32 %v306, %v307
  %v309 = vrot.slane %v308, 2
  %v310 = vadd.f32 %v308, %v309
  %v311 = vrot.slane %v310, 1
  %v312 = vadd.f32 %v310, %v311
  %v313 = vsel %vm55, %v296, 0.0
  %v314 = vsel %vm55, %v297, 0.0
  %v315 = vadd.f32 %v313, %v314
  %v316 = vsel %vm55, %v298, 0.0
  %v317 = vadd.f32 %v315, %v316
  %v318 = vsel %vm55, %v299, 0.0
  %v319 = vadd.f32 %v317, %v318
  %v320 = vrot.slane %v319, 4
  %v321 = vadd.f32 %v319, %v320
  %v322 = vrot.slane %v321, 2
  %v323 = vadd.f32 %v321, %v322
  %v324 = vrot.slane %v323, 1
  %v325 = vadd.f32 %v323, %v324
  %v326 = vmul.f32 %v312, %v149
  %v327 = vmul.f32 %v325, %v159
  %v328 = vmul.f32 %v326, %v205
  %v329 = vmul.f32 %v327, %v215
  %v330 = vld [vmem:[%s3] sm:$0x3]
  %v331 = vld [vmem:[%s3 + $0x2] sm:$0x3]
  %v332 = vld [vmem:[%s4] sm:$0x3]
  %v333 = vld [vmem:[%s4 + $0x2] sm:$0x3]
  %v334 = vld [vmem:[%s5] sm:$0x3]
  %v335 = vld [vmem:[%s5 + $0x2] sm:$0x3]
  %vm338 = vcmask 1041409
  %v339 = vsel %vm338, %v253, %v252
  %vm343 = vcmask 1043459
  %v344 = vsel %vm343, %v291, %v290
  %vm348 = vcmask 1045509
  %v349 = vsel %vm348, %v329, %v328
  %vm351 = vcmask 1041408
  %v352 = vsel %vm351, %v339, %v344
  %vm353 = vcmask 1043456
  %v354 = vsel %vm353, %v352, %v349
  %v355 = vsub.f32 %v330, %v332
  %v356 = vsub.f32 %v331, %v333
  %v357 = vsub.f32 %v330, %v334
  %v358 = vsub.f32 %v331, %v335
  %v359 = vsub.f32 %v332, %v334
  %v360 = vsub.f32 %v333, %v335
  %v363 = vrot.slane %v356, 7
  %v364 = vsel %vm338, %v363, %v355
  %v368 = vrot.slane %v357, 6
  %v369 = vrot.slane %v358, 5
  %v370 = vsel %vm343, %v369, %v368
  %v374 = vrot.slane %v359, 4
  %v375 = vrot.slane %v360, 3
  %v376 = vsel %vm348, %v375, %v374
  %v378 = vsel %vm351, %v364, %v370
  %v379 = vsel %vm353, %v378, %v376
  %v380 = vrot.slane %v355, 1
  %v381 = vsel %vm338, %v356, %v380
  %v383 = vrot.slane %v357, 7
  %v384 = vrot.slane %v358, 6
  %v385 = vsel %vm343, %v384, %v383
  %v387 = vrot.slane %v359, 5
  %v388 = vrot.slane %v360, 4
  %v389 = vsel %vm348, %v388, %v387
  %v391 = vsel %vm351, %v381, %v385
  %v392 = vsel %vm353, %v391, %v389
  %vm393 = vcmp.gt.f32.partialorder %v354, 0.99
  %v394 = vsel %vm393, 0.0, %v354
  %vm395 = vcmask 62464
  %v396 = vsel %vm395, %v394, 0.0
  %397 = vadd.xlane.f32.xlu0 %v396
  %v398 = vpop.xlane.xlu0 %397
  %v399 = vmul.f32 %v398, 0.125
  %v400 = vsel %vm395, %v394, inf
  %401 = vmin.xlane.f32.xlu0 %v400
  %v402 = vpop.xlane.xlu0 %401
  %v403 = vsub.f32 %v394, %v402
  %v404 = vsel %vm395, %v403, 0.0
  %405 = vadd.xlane.f32.xlu0 %v404
  %v406 = vpop.xlane.xlu0 %405
  %v407 = vmul.f32 %v403, %v403
  %v408 = vsel %vm395, %v407, 0.0
  %409 = vadd.xlane.f32.xlu0 %v408
  %v410 = vpop.xlane.xlu0 %409
  %v411 = vmax.f32 %v406, 1e-12
  %v412 = vrcp.pop %v411
  %v413 = vmul.f32 %v411, %v412
  %v414 = vsub.f32 1.0, %v413
  %v415 = vmul.f32 %v412, %v414
  %v416 = vadd.f32 %v412, %v415
  %vm417 = vweird.f32 %v411
  %vm418 = vweird.f32 %v412
  %vm419 = vmor %vm417, %vm418
  %v420 = vsel %vm419, %v412, %v416
  %v421 = vand.u32 2147483647, %v411
  %vm422 = vcmp.eq.f32.partialorder %v421, 8.507059e+37
  %v423 = vand.u32 %v411, 2147483648
  %v424 = vor.u32 1.1754944e-38, %v423
  %v425 = vsel %vm422, %v424, %v420
  %v426 = vmul.f32 1.0, %v425
  %v427 = vmul.f32 %v403, %v379
  %v428 = vsel %vm395, %v427, 0.0
  %429 = vadd.xlane.f32.xlu0 %v428
  %v430 = vpop.xlane.xlu0 %429
  %v431 = vmul.f32 %v430, %v426
  %v432 = vmul.f32 %v403, %v392
  %v433 = vsel %vm395, %v432, 0.0
  %434 = vadd.xlane.f32.xlu0 %v433
  %v435 = vpop.xlane.xlu0 %434
  %v436 = vmul.f32 %v435, %v426
  %v437 = vsub.f32 %v379, %v431
  %v438 = vsub.f32 %v392, %v436
  %v439 = vmul.f32 %v437, %v437
  %v440 = vmul.f32 %v438, %v438
  %v441 = vadd.f32 %v439, %v440
  %v442 = vmul.f32 %v403, %v441
  %v443 = vsel %vm395, %v442, 0.0
  %444 = vadd.xlane.f32.xlu0 %v443
  %v445 = vpop.xlane.xlu0 %444
  %v446 = vmul.f32 %v406, 2.0
  %v447 = vmul.f32 %v446, %v445
  %v448 = vmax.f32 %v410, 1e-12
  %v449 = vrcp.pop %v448
  %v450 = vmul.f32 %v448, %v449
  %v451 = vsub.f32 1.0, %v450
  %v452 = vmul.f32 %v449, %v451
  %v453 = vadd.f32 %v449, %v452
  %vm454 = vweird.f32 %v448
  %vm455 = vweird.f32 %v449
  %vm456 = vmor %vm454, %vm455
  %v457 = vsel %vm456, %v449, %v453
  %v458 = vand.u32 2147483647, %v448
  %vm459 = vcmp.eq.f32.partialorder %v458, 8.507059e+37
  %v460 = vand.u32 %v448, 2147483648
  %v461 = vor.u32 1.1754944e-38, %v460
  %v462 = vsel %vm459, %v461, %v457
  %v463 = vmul.f32 %v447, %v462
  %v464 = vsub.f32 %v399, %v463
  %v466 = vrot.slane %v464, 6
  %v468 = vsub.f32 %v464, %v466
  %v469 = vadd.f32 %v468, 0.2
  %v470 = vmax.f32 %v469, 0.0
  %v471 = vrot.slane %v464, 4
  %v473 = vsub.f32 %v464, %v471
  %v474 = vadd.f32 %v473, 0.2
  %v475 = vmax.f32 %v474, 0.0
  %v477 = vrot.slane %v475, 2
  %v479 = vadd.f32 %v470, %v477
  %vm480 = vcmask 3074
  %481 = vst.msk [vmem:[%s6 - $0x2] sm:$0xc] %vm480, %v479
  // Predicated region
  $region26: #{graph_loss.1} parent=0 // pred_check
    _
  $region27: #{graph_loss.1} parent=0 // pred_check_branch
    %483 = sbr.rel (0) target = $region29
  $region28: #{graph_loss.1} parent=0 // pred_region
    _
  $region29: #{graph_loss.1} parent=0 // pred_fallthru
    _
  // Predicated region
  $region30: #{graph_loss.1} parent=0 // pred_check
    _
  $region31: #{graph_loss.1} parent=0 // pred_check_branch
    %485 = sbr.rel (0) target = $region33
  $region32: #{graph_loss.1} parent=0 // pred_region
    _
  $region33: #{graph_loss.1} parent=0 // pred_fallthru
    _

</llo_original>
